<compile_context>
chip_gen: v7x
topology: tpu7x:2x2x1
jax: 0.10.0
libtpu: 0.0.40
codegen_flags: <defaults>
</compile_context>

<pallas_src>
import jax
import jax.numpy as jnp
from jax import lax
from jax.experimental import pallas as pl
from jax.experimental.pallas import tpu as pltpu

_LANE = 128
_SUBLANE = 8


def _round_up(x: int, m: int) -> int:
    return ((x + m - 1) // m) * m


def _detect_vmem_limit() -> int:
    """Scoped VMEM limit per generation: 48 MiB on v7x (64 MiB physical),
    ~100 MiB on v5e/v6e (128 MiB physical). Conservative default if query fails."""
    default = 48 * 1024 * 1024
    try:
        info = pltpu.get_tpu_info()
        phys = int(getattr(info, "vmem_capacity_bytes", 64 * 1024 * 1024))
    except Exception:
        return default
    return max(default, min(phys - 16 * 1024 * 1024, 100 * 1024 * 1024))


_VMEM_LIMIT = _detect_vmem_limit()
# Full padded adjacency must fit with room for compiler temporaries (iotas, masks).
_FUSED_MAX_ELEM_BYTES = _VMEM_LIMIT // 12
# Per-strip budget: 2x double-buffered in + 2x out strips + elementwise temps.
_STRIP_BUDGET = _VMEM_LIMIT // 8


def _choose_tile_rows(n_pad: int, budget_bytes: int) -> int:
    """Largest divisor of n_pad that is a multiple of 128 and whose f32
    (tile, n_pad) strip fits the per-block budget. 128 always divides n_pad."""
    best = _LANE
    tile = _LANE
    while tile <= n_pad:
        if n_pad % tile == 0 and tile * n_pad * 4 <= budget_bytes:
            best = tile
        tile += _LANE
    return best


# ----------------------------------------------------------------------------
# Pallas kernels
# ----------------------------------------------------------------------------
def _fused_laplacian_kernel(adj_ref, l_ref):
    """Single pass over a VMEM-resident adjacency:
       L = I - D^{-1/2} A D^{-1/2}, deg from row sums, inf(deg==0) -> 0."""
    a = adj_ref[...]                                       # (n, n)
    n = a.shape[0]
    deg = jnp.sum(a, axis=1, keepdims=True)                # (n, 1)
    dinv = jnp.where(deg > 0.0, lax.rsqrt(deg), 0.0)       # (n, 1) row scales
    row = lax.broadcasted_iota(jnp.int32, (n, n), 0)
    col = lax.broadcasted_iota(jnp.int32, (n, n), 1)
    on_diag = row == col
    # Exact sublane->lane relayout of dinv: masked diagonal + cross-sublane sum
    # (lands in the XLU slot, free in this mem-bound kernel).
    dinv_lane = jnp.sum(jnp.where(on_diag, dinv, 0.0), axis=0, keepdims=True)  # (1, n)
    l_ref[...] = jnp.where(on_diag, 1.0, 0.0) - (dinv * a) * dinv_lane


def _degree_kernel(adj_ref, dinv_ref):
    """Row-strip degree reduction, emitting dinv lane-dense as a (1, tile) block."""
    a = adj_ref[...]                                       # (tile, n_pad)
    tile = a.shape[0]
    deg = jnp.sum(a, axis=1, keepdims=True)                # (tile, 1)
    dinv = jnp.where(deg > 0.0, lax.rsqrt(deg), 0.0)
    r = lax.broadcasted_iota(jnp.int32, (tile, tile), 0)
    c = lax.broadcasted_iota(jnp.int32, (tile, tile), 1)
    # Exact (tile,1) -> (1,tile) relayout via masked diagonal + sublane reduce.
    dinv_ref[...] = jnp.sum(jnp.where(r == c, dinv, 0.0), axis=0, keepdims=True)


def _laplacian_strip_kernel(adj_ref, dinv_row_ref, l_ref):
    """L strip = eye_strip - dinv_i * A_strip * dinv_j.
       Row scale dinv_i is recomputed from the strip (VPU/EUP slots are idle)."""
    i = pl.program_id(0)
    a = adj_ref[...]                                       # (tile, n_pad)
    tile, n_pad = a.shape
    deg = jnp.sum(a, axis=1, keepdims=True)
    dr = jnp.where(deg > 0.0, lax.rsqrt(deg), 0.0)         # (tile, 1)
    dc = dinv_row_ref[...]                                 # (1, n_pad) resident
    row = lax.broadcasted_iota(jnp.int32, (tile, n_pad), 0) + i * tile
    col = lax.broadcasted_iota(jnp.int32, (tile, n_pad), 1)
    eye = (row == col).astype(jnp.float32)
    l_ref[...] = eye - (dr * a) * dc                       # lane-dense store


def _mlp_kernel(x_ref, w1_ref, b1_ref, w2_ref, b2_ref, o_ref):
    """Linear -> ReLU -> Linear on a (8, k_pad) padded block (row 0 is real)."""
    h = jnp.dot(x_ref[...], w1_ref[...], preferred_element_type=jnp.float32)
    h = jnp.maximum(h + b1_ref[...], 0.0)
    o = jnp.dot(h, w2_ref[...], preferred_element_type=jnp.float32) + b2_ref[...]
    o_ref[...] = o.astype(o_ref.dtype)


# ----------------------------------------------------------------------------
# Pallas wrappers
# ----------------------------------------------------------------------------
def fused_laplacian(adj_pad):
    """Small/medium N: adjacency fully VMEM-resident, read once, L aliased over A."""
    n_pad = adj_pad.shape[0]
    vmem = pl.BlockSpec(memory_space=pltpu.MemorySpace.VMEM)
    return pl.pallas_call(
        _fused_laplacian_kernel,
        out_shape=jax.ShapeDtypeStruct((n_pad, n_pad), jnp.float32),
        in_specs=[vmem],
        out_specs=vmem,
        input_output_aliases={0: 0},                       # L overwrites A in HBM
        compiler_params=pltpu.CompilerParams(vmem_limit_bytes=_VMEM_LIMIT),
        cost_estimate=pl.CostEstimate(
            flops=5 * n_pad * n_pad,
            transcendentals=n_pad,
            bytes_accessed=2 * n_pad * n_pad * 4),
    )(adj_pad)


def compute_dinv_lane(adj_pad, tile=None):
    """Streaming degree pass -> lane-dense (1, n_pad) dinv vector."""
    n_pad = adj_pad.shape[0]
    if tile is None:
        tile = _choose_tile_rows(n_pad, _STRIP_BUDGET)
    return pl.pallas_call(
        _degree_kernel,
        out_shape=jax.ShapeDtypeStruct((1, n_pad), jnp.float32),
        grid=(n_pad // tile,),
        in_specs=[pl.BlockSpec((tile, n_pad), lambda i: (i, 0))],
        out_specs=pl.BlockSpec((1, tile), lambda i: (0, i)),
        compiler_params=pltpu.CompilerParams(
            # "parallel": independent strips; shards across the 2 TCs on v7x.
            dimension_semantics=("parallel",),
            vmem_limit_bytes=_VMEM_LIMIT),
        cost_estimate=pl.CostEstimate(
            flops=2 * n_pad * n_pad,
            transcendentals=n_pad,
            bytes_accessed=n_pad * n_pad * 4 + n_pad * 4),
    )(adj_pad)


def streamed_laplacian(adj_pad, dinv_row, tile=None):
    """Large-N fallback: strip-streamed L with the output aliased over A."""
    n_pad = adj_pad.shape[0]
    if tile is None:
        tile = _choose_tile_rows(n_pad, _STRIP_BUDGET)
    return pl.pallas_call(
        _laplacian_strip_kernel,
        out_shape=jax.ShapeDtypeStruct((n_pad, n_pad), jnp.float32),
        grid=(n_pad // tile,),
        in_specs=[
            pl.BlockSpec((tile, n_pad), lambda i: (i, 0)),   # adjacency strip
            pl.BlockSpec((1, n_pad), lambda i: (0, 0)),      # dinv (resident)
        ],
        out_specs=pl.BlockSpec((tile, n_pad), lambda i: (i, 0)),
        input_output_aliases={0: 0},                         # L strip over A strip
        compiler_params=pltpu.CompilerParams(
            dimension_semantics=("parallel",),
            vmem_limit_bytes=_VMEM_LIMIT),
        cost_estimate=pl.CostEstimate(
            flops=5 * n_pad * n_pad,
            transcendentals=n_pad,
            bytes_accessed=2 * n_pad * n_pad * 4 + n_pad * 4),
    )(adj_pad, dinv_row)


def build_normalized_laplacian(adj_pad):
    n_pad = adj_pad.shape[0]
    if n_pad * n_pad * 4 <= _FUSED_MAX_ELEM_BYTES:
        return fused_laplacian(adj_pad)
    dinv_row = compute_dinv_lane(adj_pad)
    return streamed_laplacian(adj_pad, dinv_row)


def run_mlp(x_pad, w1_p, b1_p, w2_p, b2_p):
    m, h_pad = x_pad.shape[0], w2_p.shape[1]
    vmem = pl.BlockSpec(memory_space=pltpu.MemorySpace.VMEM)
    return pl.pallas_call(
        _mlp_kernel,
        out_shape=jax.ShapeDtypeStruct((m, h_pad), jnp.float32),
        in_specs=[vmem] * 5,
        out_specs=vmem,
    )(x_pad, w1_p, b1_p, w2_p, b2_p)


# ----------------------------------------------------------------------------
# GraphSpectralEncoder (JAX / Pallas)
# ----------------------------------------------------------------------------
class GraphSpectralEncoder:
    def __init__(self, k_eigs: int, hidden: int, key=None):
        self.k = k_eigs
        self.hidden = hidden
        if key is None:
            key = jax.random.PRNGKey(0)
        k1, k2, k3, k4 = jax.random.split(key, 4)
        # torch nn.Linear default init: U(-1/sqrt(fan_in), 1/sqrt(fan_in)).
        # Weights stored as [in, out] so y = x @ W + b matches torch exactly.
        bound1 = 1.0 / (k_eigs ** 0.5)
        bound2 = 1.0 / (hidden ** 0.5)
        self.w1 = jax.random.uniform(k1, (k_eigs, hidden), jnp.float32, -bound1, bound1)
        self.b1 = jax.random.uniform(k2, (1, hidden), jnp.float32, -bound1, bound1)
        self.w2 = jax.random.uniform(k3, (hidden, hidden), jnp.float32, -bound2, bound2)
        self.b2 = jax.random.uniform(k4, (1, hidden), jnp.float32, -bound2, bound2)

        # Lane/sublane padded copies (zero padding is mathematically exact).
        self.k_pad = _round_up(k_eigs, _LANE)
        self.h_pad = _round_up(hidden, _LANE)
        self.w1_p = jnp.zeros((self.k_pad, self.h_pad), jnp.float32).at[
            :k_eigs, :hidden].set(self.w1)
        self.b1_p = jnp.zeros((1, self.h_pad), jnp.float32).at[:, :hidden].set(self.b1)
        self.w2_p = jnp.zeros((self.h_pad, self.h_pad), jnp.float32).at[
            :hidden, :hidden].set(self.w2)
        self.b2_p = jnp.zeros((1, self.h_pad), jnp.float32).at[:, :hidden].set(self.b2)

        # One jitted program: scatter + Laplacian kernels + eigvalsh + MLP kernel,
        # so per-op dispatch overhead (dominant at small N) is gone.
        self._forward_jit = jax.jit(self._process_single_graph_impl,
                                    static_argnums=(1,))

    def _process_single_graph_impl(self, edge_index, num_nodes: int):
        # Pad N to a lane multiple so Laplacian stores are unmasked full vregs.
        n_pad = _round_up(max(num_nodes, _SUBLANE), _LANE)

        # Dense adjacency from edge_index (glue scatter; scatter-add matches
        # torch_geometric degree semantics for duplicate edges).
        src, dst = edge_index[0], edge_index[1]
        adj = jnp.zeros((n_pad, n_pad), jnp.float32).at[src, dst].add(1.0)

        # Pallas: normalized Laplacian (fused single read for small N,
        # strip-streamed two-pass for large N); L aliased over adj in HBM.
        # Note: isolated nodes get L[i,i] = 1 (eye - 0), matching the torch
        # reference fallback (deg_inv_sqrt[inf] = 0).
        L_pad = build_normalized_laplacian(adj)
        L = L_pad[:num_nodes, :num_nodes]

        # TODO(synk): shift-invert Lanczos eigsh has no clean Pallas equivalent;
        # dense eigvalsh glue (ascending eigenvalues, drop lambda_0).
        eigs = jnp.linalg.eigvalsh(L)
        k_requested = min(self.k + 1, num_nodes - 1)
        if k_requested <= 1:
            spec = jnp.zeros((self.k,), jnp.float32)
        else:
            spec = eigs[1:k_requested].astype(jnp.float32)
            if spec.shape[0] < self.k:
                spec = jnp.concatenate(
                    [spec, jnp.zeros((self.k - spec.shape[0],), jnp.float32)])

        # Pallas MLP on a padded (8, k_pad) block; row 0 holds the real spectrum.
        x_pad = jnp.zeros((_SUBLANE, self.k_pad), jnp.float32).at[0, : self.k].set(spec)
        out = run_mlp(x_pad, self.w1_p, self.b1_p, self.w2_p, self.b2_p)
        return out[0, : self.hidden]                    # (hidden,)

    def __call__(self, edge_index, num_nodes: int, batch=None, num_graphs=None):
        single_emb = self._forward_jit(edge_index, int(num_nodes))
        if batch is not None:
            if num_graphs is None:   # one small host sync, outside the jitted program
                num_graphs = int(jax.device_get(jnp.max(batch))) + 1
            return jnp.broadcast_to(single_emb[None, :], (num_graphs, self.hidden))
        return single_emb


# ----------------------------------------------------------------------------
# Example run + kernel self-test
# ----------------------------------------------------------------------------
if __name__ == "__main__":
    key = jax.random.PRNGKey(0)

    # ---- self-test: fused and streamed Laplacian kernels vs jnp reference ----
    n_test = 256
    rnd = (jax.random.uniform(key, (n_test, n_test)) < 0.05).astype(jnp.float32)
    adj_test = jnp.maximum(rnd, rnd.T) * (1.0 - jnp.eye(n_test, dtype=jnp.float32))

    deg_ref = jnp.sum(adj_test, axis=1)
    dinv_ref = jnp.where(deg_ref > 0.0, deg_ref ** -0.5, 0.0)
    L_ref = (jnp.eye(n_test, dtype=jnp.float32)
             - dinv_ref[:, None] * adj_test * dinv_ref[None, :])

    L_fused = jax.jit(fused_laplacian)(adj_test)

    @jax.jit
    def _streamed_path(a):
        dinv_row = compute_dinv_lane(a, tile=128)
        return streamed_laplacian(a, dinv_row, tile=128)

    L_stream = _streamed_path(adj_test)

    jax.block_until_ready((L_fused, L_stream))
    assert float(jnp.max(jnp.abs(L_fused - L_ref))) < 1e-5
    assert float(jnp.max(jnp.abs(L_stream - L_ref))) < 1e-5

    # ---- full forward pass on a small deterministic graph ----
    K_EIGS = 8
    HIDDEN = 32
    NUM_NODES = 16

    # Undirected ring over 16 nodes (both directions).
    src = jnp.arange(NUM_NODES, dtype=jnp.int32)
    dst = (src + 1) % NUM_NODES
    edge_index = jnp.concatenate(
        [jnp.stack([src, dst], axis=0), jnp.stack([dst, src], axis=0)], axis=1
    )  # (2, 2*N)

    # Node->graph assignment with 2 graphs (8 nodes each) to exercise the batch path.
    batch = jnp.concatenate([jnp.zeros((8,), jnp.int32), jnp.ones((8,), jnp.int32)])

    encoder = GraphSpectralEncoder(K_EIGS, HIDDEN, key=key)

    out_single = encoder(edge_index, NUM_NODES)            # (hidden,)
    out_batched = encoder(edge_index, NUM_NODES, batch)    # (num_graphs, hidden)

    jax.block_until_ready(out_single)
    jax.block_until_ready(out_batched)

    assert out_single.shape == (HIDDEN,)
    assert out_batched.shape == (2, HIDDEN)
    assert bool(jnp.all(jnp.isfinite(out_single)))
    assert bool(jnp.all(jnp.isfinite(out_batched)))
    print("KERNEL_OK")
</pallas_src>

<mosaic_0001>
module attributes {stable_mosaic.version = 11 : i64} {
  func.func @_fused_laplacian_kernel(%arg0: memref<256x256xf32, #tpu.memory_space<vmem>>, %arg1: memref<256x256xf32, #tpu.memory_space<vmem>>) attributes {dimension_semantics = [], scalar_prefetch = 0 : i64, scratch_operands = 0 : i64, tpu.core_type = #tpu.core_type<tc>} {
    %c0 = arith.constant 0 : index
    %c0_0 = arith.constant 0 : index
    %0 = vector.load %arg0[%c0, %c0_0] : memref<256x256xf32, #tpu.memory_space<vmem>>, vector<256x256xf32>
    %cst = arith.constant dense<0.000000e+00> : vector<256xf32>
    %1 = vector.multi_reduction <add>, %0, %cst [1] : vector<256x256xf32> to vector<256xf32>
    %2 = vector.shape_cast %1 : vector<256xf32> to vector<256x1xf32>
    %cst_1 = arith.constant 0.000000e+00 : f32
    %3 = vector.broadcast %cst_1 : f32 to vector<256x1xf32>
    %4 = arith.cmpf ogt, %2, %3 : vector<256x1xf32>
    %5 = math.rsqrt %2 : vector<256x1xf32>
    %cst_2 = arith.constant 0.000000e+00 : f32
    %6 = vector.broadcast %cst_2 : f32 to vector<256x1xf32>
    %7 = arith.select %4, %5, %6 : vector<256x1xi1>, vector<256x1xf32>
    %8 = tpu.iota {dimensions = array<i32: 0>} : vector<256x256xi32>
    %9 = tpu.iota {dimensions = array<i32: 1>} : vector<256x256xi32>
    %10 = arith.cmpi eq, %8, %9 : vector<256x256xi32>
    %cst_3 = arith.constant 0.000000e+00 : f32
    %11 = vector.shape_cast %7 : vector<256x1xf32> to vector<256x1xf32>
    %12 = vector.broadcast %11 : vector<256x1xf32> to vector<256x256xf32>
    %13 = vector.broadcast %cst_3 : f32 to vector<256x256xf32>
    %14 = arith.select %10, %12, %13 : vector<256x256xi1>, vector<256x256xf32>
    %cst_4 = arith.constant dense<0.000000e+00> : vector<256xf32>
    %15 = vector.multi_reduction <add>, %14, %cst_4 [0] : vector<256x256xf32> to vector<256xf32>
    %16 = vector.shape_cast %15 : vector<256xf32> to vector<1x256xf32>
    %cst_5 = arith.constant 1.000000e+00 : f32
    %cst_6 = arith.constant 0.000000e+00 : f32
    %17 = vector.broadcast %cst_5 : f32 to vector<256x256xf32>
    %18 = vector.broadcast %cst_6 : f32 to vector<256x256xf32>
    %19 = arith.select %10, %17, %18 : vector<256x256xi1>, vector<256x256xf32>
    %20 = vector.broadcast %7 : vector<256x1xf32> to vector<256x256xf32>
    %21 = arith.mulf %20, %0 : vector<256x256xf32>
    %22 = vector.broadcast %16 : vector<1x256xf32> to vector<256x256xf32>
    %23 = arith.mulf %21, %22 : vector<256x256xf32>
    %24 = arith.subf %19, %23 : vector<256x256xf32>
    %c0_7 = arith.constant 0 : index
    %c0_8 = arith.constant 0 : index
    %25 = vector.load %arg1[%c0_7, %c0_8] : memref<256x256xf32, #tpu.memory_space<vmem>>, vector<256x256xf32>
    tpu.vector_store %arg1[%c0_7, %c0_8], %24 {strides = array<i32>} : memref<256x256xf32, #tpu.memory_space<vmem>>, vector<256x256xf32>,
    return
  }
}

</mosaic_0001>

<llo_original>
// kernel: fused_laplacian.1
$region0: #{fused_laplacian.1}
  #allocation0 [shape = 'u32[]', space=smem, size = 0x4, offset = 0x4, fixed_abs, tag = 'smem constant byte address 0x4 - core index']
  #allocation1 [shape = 'u32[144,128]{1,0:T(1,128)}', space=vmem, size = 0x12000, scoped, tag = 'internal scratch']
  %s0 = inlined_call_operand.hbm [shape: f32[256,256], index: 0, kind: input, shape index: {}, may-alias: {0,1}]
  %s1 = inlined_call_operand.hbm [shape: f32[256,256], index: 1, kind: output, shape index: {}, may-alias: {0,1}]
  %s2 = sld [smem:[#allocation0]]
  $region18: #{fused_laplacian.1} parent=0
    _
  %s4 = ssub.s32 1, %s2
  %s5 = scalar_select 0, %s4, %s2
  $region1: #{fused_laplacian.1} parent=0
    #allocation2 [shape = 'u8[262144]{0}', space=vmem, size = 0x40000, scoped, tag = 'input window, operand 0, single buffered']
    #allocation3 [shape = 's32[1]{0}', space=sflag, size = 0x4, scoped, tag = 'scoped memory for fused_laplacian.1']
    #allocation4 [shape = 's32[1]{0}', space=sflag, size = 0x4, scoped, tag = 'scoped memory for fused_laplacian.1']
    #allocation5 [shape = 'u8[262144]{0}', space=vmem, size = 0x40000, scoped, tag = 'output window, operand 0, single buffered']
    %6 = vsyncpa [#allocation3], 0
    %7 = vsyncpa [#allocation4], 0
    // Predicated region
    $region2: #{fused_laplacian.1} parent=1 // pred_check
      _
    $region3: #{fused_laplacian.1} parent=1 // pred_check_branch
      %9 = sbr.rel (0) target = $region5
    $region4: #{fused_laplacian.1} parent=1 // pred_region
      %s11 = ssub.s32 8192, 8192
      %12 = vsyncadd [#allocation3], %s11
      %s13 = sshll.u32 [#allocation2], 4
      %s14 = int_to_ptr.vmem [resolvable:$true] %s13
      %19 = dma.hbm_to_vmem [thread:$0]  %s0, 8192, %s14, [#allocation3], 256, 256, 16
    $region5: #{fused_laplacian.1} parent=1 // pred_fallthru
      _
    // Predicated region
    $region6: #{fused_laplacian.1} parent=1 // pred_check
      _
    $region7: #{fused_laplacian.1} parent=1 // pred_check_branch
      %21 = sbr.rel (0) target = $region9
    $region8: #{fused_laplacian.1} parent=1 // pred_region
      %22 = dma.done [#allocation3], 8192
    $region9: #{fused_laplacian.1} parent=1 // pred_fallthru
      _
    %v23 = vld [vmem:[#allocation2] sm:$0xff]
    %v24 = vld [vmem:[#allocation2 + $0x8] sm:$0xff]
    %v25 = vld [vmem:[#allocation2 + $0x10] sm:$0xff]
    %v26 = vld [vmem:[#allocation2 + $0x18] sm:$0xff]
    %v27 = vld [vmem:[#allocation2 + $0x20] sm:$0xff]
    %v28 = vld [vmem:[#allocation2 + $0x28] sm:$0xff]
    %v29 = vld [vmem:[#allocation2 + $0x30] sm:$0xff]
    %v30 = vld [vmem:[#allocation2 + $0x38] sm:$0xff]
    %v31 = vld [vmem:[#allocation2 + $0x40] sm:$0xff]
    %v32 = vld [vmem:[#allocation2 + $0x48] sm:$0xff]
    %v33 = vld [vmem:[#allocation2 + $0x50] sm:$0xff]
    %v34 = vld [vmem:[#allocation2 + $0x58] sm:$0xff]
    %v35 = vld [vmem:[#allocation2 + $0x60] sm:$0xff]
    %v36 = vld [vmem:[#allocation2 + $0x68] sm:$0xff]
    %v37 = vld [vmem:[#allocation2 + $0x70] sm:$0xff]
    %v38 = vld [vmem:[#allocation2 + $0x78] sm:$0xff]
    %v39 = vld [vmem:[#allocation2 + $0x80] sm:$0xff]
    %v40 = vld [vmem:[#allocation2 + $0x88] sm:$0xff]
    %v41 = vld [vmem:[#allocation2 + $0x90] sm:$0xff]
    %v42 = vld [vmem:[#allocation2 + $0x98] sm:$0xff]
    %v43 = vld [vmem:[#allocation2 + $0xa0] sm:$0xff]
    %v44 = vld [vmem:[#allocation2 + $0xa8] sm:$0xff]
    %v45 = vld [vmem:[#allocation2 + $0xb0] sm:$0xff]
    %v46 = vld [vmem:[#allocation2 + $0xb8] sm:$0xff]
    %v47 = vld [vmem:[#allocation2 + $0xc0] sm:$0xff]
    %v48 = vld [vmem:[#allocation2 + $0xc8] sm:$0xff]
    %v49 = vld [vmem:[#allocation2 + $0xd0] sm:$0xff]
    %v50 = vld [vmem:[#allocation2 + $0xd8] sm:$0xff]
    %v51 = vld [vmem:[#allocation2 + $0xe0] sm:$0xff]
    %v52 = vld [vmem:[#allocation2 + $0xe8] sm:$0xff]
    %v53 = vld [vmem:[#allocation2 + $0xf0] sm:$0xff]
    %v54 = vld [vmem:[#allocation2 + $0xf8] sm:$0xff]
    %v55 = vld [vmem:[#allocation2 + $0x100] sm:$0xff]
    %v56 = vld [vmem:[#allocation2 + $0x108] sm:$0xff]
    %v57 = vld [vmem:[#allocation2 + $0x110] sm:$0xff]
    %v58 = vld [vmem:[#allocation2 + $0x118] sm:$0xff]
    %v59 = vld [vmem:[#allocation2 + $0x120] sm:$0xff]
    %v60 = vld [vmem:[#allocation2 + $0x128] sm:$0xff]
    %v61 = vld [vmem:[#allocation2 + $0x130] sm:$0xff]
    %v62 = vld [vmem:[#allocation2 + $0x138] sm:$0xff]
    %v63 = vld [vmem:[#allocation2 + $0x140] sm:$0xff]
    %v64 = vld [vmem:[#allocation2 + $0x148] sm:$0xff]
    %v65 = vld [vmem:[#allocation2 + $0x150] sm:$0xff]
    %v66 = vld [vmem:[#allocation2 + $0x158] sm:$0xff]
    %v67 = vld [vmem:[#allocation2 + $0x160] sm:$0xff]
    %v68 = vld [vmem:[#allocation2 + $0x168] sm:$0xff]
    %v69 = vld [vmem:[#allocation2 + $0x170] sm:$0xff]
    %v70 = vld [vmem:[#allocation2 + $0x178] sm:$0xff]
    %v71 = vld [vmem:[#allocation2 + $0x180] sm:$0xff]
    %v72 = vld [vmem:[#allocation2 + $0x188] sm:$0xff]
    %v73 = vld [vmem:[#allocation2 + $0x190] sm:$0xff]
    %v74 = vld [vmem:[#allocation2 + $0x198] sm:$0xff]
    %v75 = vld [vmem:[#allocation2 + $0x1a0] sm:$0xff]
    %v76 = vld [vmem:[#allocation2 + $0x1a8] sm:$0xff]
    %v77 = vld [vmem:[#allocation2 + $0x1b0] sm:$0xff]
    %v78 = vld [vmem:[#allocation2 + $0x1b8] sm:$0xff]
    %v79 = vld [vmem:[#allocation2 + $0x1c0] sm:$0xff]
    %v80 = vld [vmem:[#allocation2 + $0x1c8] sm:$0xff]
    %v81 = vld [vmem:[#allocation2 + $0x1d0] sm:$0xff]
    %v82 = vld [vmem:[#allocation2 + $0x1d8] sm:$0xff]
    %v83 = vld [vmem:[#allocation2 + $0x1e0] sm:$0xff]
    %v84 = vld [vmem:[#allocation2 + $0x1e8] sm:$0xff]
    %v85 = vld [vmem:[#allocation2 + $0x1f0] sm:$0xff]
    %v86 = vld [vmem:[#allocation2 + $0x1f8] sm:$0xff]
    %v87 = vadd.f32 %v23, %v24
    %88 = vadd.xlane.f32.xlu0 %v87
    %v89 = vpop.xlane.xlu0 %88
    %v90 = vadd.f32 %v25, %v26
    %91 = vadd.xlane.f32.xlu0 %v90
    %v92 = vpop.xlane.xlu0 %91
    %v93 = vadd.f32 %v27, %v28
    %94 = vadd.xlane.f32.xlu0 %v93
    %v95 = vpop.xlane.xlu0 %94
    %v96 = vadd.f32 %v29, %v30
    %97 = vadd.xlane.f32.xlu0 %v96
    %v98 = vpop.xlane.xlu0 %97
    %v99 = vadd.f32 %v31, %v32
    %100 = vadd.xlane.f32.xlu0 %v99
    %v101 = vpop.xlane.xlu0 %100
    %v102 = vadd.f32 %v33, %v34
    %103 = vadd.xlane.f32.xlu0 %v102
    %v104 = vpop.xlane.xlu0 %103
    %v105 = vadd.f32 %v35, %v36
    %106 = vadd.xlane.f32.xlu0 %v105
    %v107 = vpop.xlane.xlu0 %106
    %v108 = vadd.f32 %v37, %v38
    %109 = vadd.xlane.f32.xlu0 %v108
    %v110 = vpop.xlane.xlu0 %109
    %v111 = vadd.f32 %v39, %v40
    %112 = vadd.xlane.f32.xlu0 %v111
    %v113 = vpop.xlane.xlu0 %112
    %v114 = vadd.f32 %v41, %v42
    %115 = vadd.xlane.f32.xlu0 %v114
    %v116 = vpop.xlane.xlu0 %115
    %v117 = vadd.f32 %v43, %v44
    %118 = vadd.xlane.f32.xlu0 %v117
    %v119 = vpop.xlane.xlu0 %118
    %v120 = vadd.f32 %v45, %v46
    %121 = vadd.xlane.f32.xlu0 %v120
    %v122 = vpop.xlane.xlu0 %121
    %v123 = vadd.f32 %v47, %v48
    %124 = vadd.xlane.f32.xlu0 %v123
    %v125 = vpop.xlane.xlu0 %124
    %v126 = vadd.f32 %v49, %v50
    %127 = vadd.xlane.f32.xlu0 %v126
    %v128 = vpop.xlane.xlu0 %127
    %v129 = vadd.f32 %v51, %v52
    %130 = vadd.xlane.f32.xlu0 %v129
    %v131 = vpop.xlane.xlu0 %130
    %v132 = vadd.f32 %v53, %v54
    %133 = vadd.xlane.f32.xlu0 %v132
    %v134 = vpop.xlane.xlu0 %133
    %v135 = vadd.f32 %v55, %v56
    %136 = vadd.xlane.f32.xlu0 %v135
    %v137 = vpop.xlane.xlu0 %136
    %v138 = vadd.f32 %v57, %v58
    %139 = vadd.xlane.f32.xlu0 %v138
    %v140 = vpop.xlane.xlu0 %139
    %v141 = vadd.f32 %v59, %v60
    %142 = vadd.xlane.f32.xlu0 %v141
    %v143 = vpop.xlane.xlu0 %142
    %v144 = vadd.f32 %v61, %v62
    %145 = vadd.xlane.f32.xlu0 %v144
    %v146 = vpop.xlane.xlu0 %145
    %v147 = vadd.f32 %v63, %v64
    %148 = vadd.xlane.f32.xlu0 %v147
    %v149 = vpop.xlane.xlu0 %148
    %v150 = vadd.f32 %v65, %v66
    %151 = vadd.xlane.f32.xlu0 %v150
    %v152 = vpop.xlane.xlu0 %151
    %v153 = vadd.f32 %v67, %v68
    %154 = vadd.xlane.f32.xlu0 %v153
    %v155 = vpop.xlane.xlu0 %154
    %v156 = vadd.f32 %v69, %v70
    %157 = vadd.xlane.f32.xlu0 %v156
    %v158 = vpop.xlane.xlu0 %157
    %v159 = vadd.f32 %v71, %v72
    %160 = vadd.xlane.f32.xlu0 %v159
    %v161 = vpop.xlane.xlu0 %160
    %v162 = vadd.f32 %v73, %v74
    %163 = vadd.xlane.f32.xlu0 %v162
    %v164 = vpop.xlane.xlu0 %163
    %v165 = vadd.f32 %v75, %v76
    %166 = vadd.xlane.f32.xlu0 %v165
    %v167 = vpop.xlane.xlu0 %166
    %v168 = vadd.f32 %v77, %v78
    %169 = vadd.xlane.f32.xlu0 %v168
    %v170 = vpop.xlane.xlu0 %169
    %v171 = vadd.f32 %v79, %v80
    %172 = vadd.xlane.f32.xlu0 %v171
    %v173 = vpop.xlane.xlu0 %172
    %v174 = vadd.f32 %v81, %v82
    %175 = vadd.xlane.f32.xlu0 %v174
    %v176 = vpop.xlane.xlu0 %175
    %v177 = vadd.f32 %v83, %v84
    %178 = vadd.xlane.f32.xlu0 %v177
    %v179 = vpop.xlane.xlu0 %178
    %v180 = vadd.f32 %v85, %v86
    %181 = vadd.xlane.f32.xlu0 %v180
    %v182 = vpop.xlane.xlu0 %181
    %vm183 = vcmp.gt.f32.partialorder %v89, 0.0
    %vm184 = vcmp.gt.f32.partialorder %v92, 0.0
    %vm185 = vcmp.gt.f32.partialorder %v95, 0.0
    %vm186 = vcmp.gt.f32.partialorder %v98, 0.0
    %vm187 = vcmp.gt.f32.partialorder %v101, 0.0
    %vm188 = vcmp.gt.f32.partialorder %v104, 0.0
    %vm189 = vcmp.gt.f32.partialorder %v107, 0.0
    %vm190 = vcmp.gt.f32.partialorder %v110, 0.0
    %vm191 = vcmp.gt.f32.partialorder %v113, 0.0
    %vm192 = vcmp.gt.f32.partialorder %v116, 0.0
    %vm193 = vcmp.gt.f32.partialorder %v119, 0.0
    %vm194 = vcmp.gt.f32.partialorder %v122, 0.0
    %vm195 = vcmp.gt.f32.partialorder %v125, 0.0
    %vm196 = vcmp.gt.f32.partialorder %v128, 0.0
    %vm197 = vcmp.gt.f32.partialorder %v131, 0.0
    %vm198 = vcmp.gt.f32.partialorder %v134, 0.0
    %vm199 = vcmp.gt.f32.partialorder %v137, 0.0
    %vm200 = vcmp.gt.f32.partialorder %v140, 0.0
    %vm201 = vcmp.gt.f32.partialorder %v143, 0.0
    %vm202 = vcmp.gt.f32.partialorder %v146, 0.0
    %vm203 = vcmp.gt.f32.partialorder %v149, 0.0
    %vm204 = vcmp.gt.f32.partialorder %v152, 0.0
    %vm205 = vcmp.gt.f32.partialorder %v155, 0.0
    %vm206 = vcmp.gt.f32.partialorder %v158, 0.0
    %vm207 = vcmp.gt.f32.partialorder %v161, 0.0
    %vm208 = vcmp.gt.f32.partialorder %v164, 0.0
    %vm209 = vcmp.gt.f32.partialorder %v167, 0.0
    %vm210 = vcmp.gt.f32.partialorder %v170, 0.0
    %vm211 = vcmp.gt.f32.partialorder %v173, 0.0
    %vm212 = vcmp.gt.f32.partialorder %v176, 0.0
    %vm213 = vcmp.gt.f32.partialorder %v179, 0.0
    %vm214 = vcmp.gt.f32.partialorder %v182, 0.0
    %v215 = vrsqrt.pop %v89
    %v216 = vrsqrt.pop %v92
    %v217 = vrsqrt.pop %v95
    %v218 = vrsqrt.pop %v98
    %v219 = vrsqrt.pop %v101
    %v220 = vrsqrt.pop %v104
    %v221 = vrsqrt.pop %v107
    %v222 = vrsqrt.pop %v110
    %v223 = vrsqrt.pop %v113
    %v224 = vrsqrt.pop %v116
    %v225 = vrsqrt.pop %v119
    %v226 = vrsqrt.pop %v122
    %v227 = vrsqrt.pop %v125
    %v228 = vrsqrt.pop %v128
    %v229 = vrsqrt.pop %v131
    %v230 = vrsqrt.pop %v134
    %v231 = vrsqrt.pop %v137
    %v232 = vrsqrt.pop %v140
    %v233 = vrsqrt.pop %v143
    %v234 = vrsqrt.pop %v146
    %v235 = vrsqrt.pop %v149
    %v236 = vrsqrt.pop %v152
    %v237 = vrsqrt.pop %v155
    %v238 = vrsqrt.pop %v158
    %v239 = vrsqrt.pop %v161
    %v240 = vrsqrt.pop %v164
    %v241 = vrsqrt.pop %v167
    %v242 = vrsqrt.pop %v170
    %v243 = vrsqrt.pop %v173
    %v244 = vrsqrt.pop %v176
    %v245 = vrsqrt.pop %v179
    %v246 = vrsqrt.pop %v182
    %v247 = vsel %vm183, %v215, 0.0
    %v248 = vsel %vm184, %v216, 0.0
    %v249 = vsel %vm185, %v217, 0.0
    %v250 = vsel %vm186, %v218, 0.0
    %v251 = vsel %vm187, %v219, 0.0
    %v252 = vsel %vm188, %v220, 0.0
    %v253 = vsel %vm189, %v221, 0.0
    %v254 = vsel %vm190, %v222, 0.0
    %v255 = vsel %vm191, %v223, 0.0
    %v256 = vsel %vm192, %v224, 0.0
    %v257 = vsel %vm193, %v225, 0.0
    %v258 = vsel %vm194, %v226, 0.0
    %v259 = vsel %vm195, %v227, 0.0
    %v260 = vsel %vm196, %v228, 0.0
    %v261 = vsel %vm197, %v229, 0.0
    %v262 = vsel %vm198, %v230, 0.0
    %v263 = vsel %vm199, %v231, 0.0
    %v264 = vsel %vm200, %v232, 0.0
    %v265 = vsel %vm201, %v233, 0.0
    %v266 = vsel %vm202, %v234, 0.0
    %v267 = vsel %vm203, %v235, 0.0
    %v268 = vsel %vm204, %v236, 0.0
    %v269 = vsel %vm205, %v237, 0.0
    %v270 = vsel %vm206, %v238, 0.0
    %v271 = vsel %vm207, %v239, 0.0
    %v272 = vsel %vm208, %v240, 0.0
    %v273 = vsel %vm209, %v241, 0.0
    %v274 = vsel %vm210, %v242, 0.0
    %v275 = vsel %vm211, %v243, 0.0
    %v276 = vsel %vm212, %v244, 0.0
    %v277 = vsel %vm213, %v245, 0.0
    %v278 = vsel %vm214, %v246, 0.0
    %v279 = vlaneseq
    %v280 = vshrl.u32 %v279, 7
    %v281 = vadd.s32 %v280, 8
    %v282 = vadd.s32 %v280, 16
    %v283 = vadd.s32 %v280, 24
    %v284 = vadd.s32 %v280, 32
    %v285 = vadd.s32 %v280, 40
    %v286 = vadd.s32 %v280, 48
    %v287 = vadd.s32 %v280, 56
    %v288 = vadd.s32 %v280, 64
    %v289 = vadd.s32 %v280, 72
    %v290 = vadd.s32 %v280, 80
    %v291 = vadd.s32 %v280, 88
    %v292 = vadd.s32 %v280, 96
    %v293 = vadd.s32 %v280, 104
    %v294 = vadd.s32 %v280, 112
    %v295 = vadd.s32 %v280, 120
    %v296 = vadd.s32 %v280, 128
    %v297 = vadd.s32 %v280, 136
    %v298 = vadd.s32 %v280, 144
    %v299 = vadd.s32 %v280, 152
    %v300 = vadd.s32 %v280, 160
    %v301 = vadd.s32 %v280, 168
    %v302 = vadd.s32 %v280, 176
    %v303 = vadd.s32 %v280, 184
    %v304 = vadd.s32 %v280, 192
    %v305 = vadd.s32 %v280, 200
    %v306 = vadd.s32 %v280, 208
    %v307 = vadd.s32 %v280, 216
    %v308 = vadd.s32 %v280, 224
    %v309 = vadd.s32 %v280, 232
    %v310 = vadd.s32 %v280, 240
    %v311 = vadd.s32 %v280, 248
    %v312 = vlaneseq
    %v313 = vand.u32 %v312, 127
    %v314 = vadd.s32 %v313, 128
    %vm315 = vcmp.eq.s32.totalorder %v280, %v313
    %vm316 = vcmp.eq.s32.totalorder %v280, %v314
    %vm317 = vcmp.eq.s32.totalorder %v281, %v313
    %vm318 = vcmp.eq.s32.totalorder %v281, %v314
    %vm319 = vcmp.eq.s32.totalorder %v282, %v313
    %vm320 = vcmp.eq.s32.totalorder %v282, %v314
    %vm321 = vcmp.eq.s32.totalorder %v283, %v313
    %vm322 = vcmp.eq.s32.totalorder %v283, %v314
    %vm323 = vcmp.eq.s32.totalorder %v284, %v313
    %vm324 = vcmp.eq.s32.totalorder %v284, %v314
    %vm325 = vcmp.eq.s32.totalorder %v285, %v313
    %vm326 = vcmp.eq.s32.totalorder %v285, %v314
    %vm327 = vcmp.eq.s32.totalorder %v286, %v313
    %vm328 = vcmp.eq.s32.totalorder %v286, %v314
    %vm329 = vcmp.eq.s32.totalorder %v287, %v313
    %vm330 = vcmp.eq.s32.totalorder %v287, %v314
    %vm331 = vcmp.eq.s32.totalorder %v288, %v313
    %vm332 = vcmp.eq.s32.totalorder %v288, %v314
    %vm333 = vcmp.eq.s32.totalorder %v289, %v313
    %vm334 = vcmp.eq.s32.totalorder %v289, %v314
    %vm335 = vcmp.eq.s32.totalorder %v290, %v313
    %vm336 = vcmp.eq.s32.totalorder %v290, %v314
    %vm337 = vcmp.eq.s32.totalorder %v291, %v313
    %vm338 = vcmp.eq.s32.totalorder %v291, %v314
    %vm339 = vcmp.eq.s32.totalorder %v292, %v313
    %vm340 = vcmp.eq.s32.totalorder %v292, %v314
    %vm341 = vcmp.eq.s32.totalorder %v293, %v313
    %vm342 = vcmp.eq.s32.totalorder %v293, %v314
    %vm343 = vcmp.eq.s32.totalorder %v294, %v313
    %vm344 = vcmp.eq.s32.totalorder %v294, %v314
    %vm345 = vcmp.eq.s32.totalorder %v295, %v313
    %vm346 = vcmp.eq.s32.totalorder %v295, %v314
    %vm347 = vcmp.eq.s32.totalorder %v296, %v313
    %vm348 = vcmp.eq.s32.totalorder %v296, %v314
    %vm349 = vcmp.eq.s32.totalorder %v297, %v313
    %vm350 = vcmp.eq.s32.totalorder %v297, %v314
    %vm351 = vcmp.eq.s32.totalorder %v298, %v313
    %vm352 = vcmp.eq.s32.totalorder %v298, %v314
    %vm353 = vcmp.eq.s32.totalorder %v299, %v313
    %vm354 = vcmp.eq.s32.totalorder %v299, %v314
    %vm355 = vcmp.eq.s32.totalorder %v300, %v313
    %vm356 = vcmp.eq.s32.totalorder %v300, %v314
    %vm357 = vcmp.eq.s32.totalorder %v301, %v313
    %vm358 = vcmp.eq.s32.totalorder %v301, %v314
    %vm359 = vcmp.eq.s32.totalorder %v302, %v313
    %vm360 = vcmp.eq.s32.totalorder %v302, %v314
    %vm361 = vcmp.eq.s32.totalorder %v303, %v313
    %vm362 = vcmp.eq.s32.totalorder %v303, %v314
    %vm363 = vcmp.eq.s32.totalorder %v304, %v313
    %vm364 = vcmp.eq.s32.totalorder %v304, %v314
    %vm365 = vcmp.eq.s32.totalorder %v305, %v313
    %vm366 = vcmp.eq.s32.totalorder %v305, %v314
    %vm367 = vcmp.eq.s32.totalorder %v306, %v313
    %vm368 = vcmp.eq.s32.totalorder %v306, %v314
    %vm369 = vcmp.eq.s32.totalorder %v307, %v313
    %vm370 = vcmp.eq.s32.totalorder %v307, %v314
    %vm371 = vcmp.eq.s32.totalorder %v308, %v313
    %vm372 = vcmp.eq.s32.totalorder %v308, %v314
    %vm373 = vcmp.eq.s32.totalorder %v309, %v313
    %vm374 = vcmp.eq.s32.totalorder %v309, %v314
    %vm375 = vcmp.eq.s32.totalorder %v310, %v313
    %vm376 = vcmp.eq.s32.totalorder %v310, %v314
    %vm377 = vcmp.eq.s32.totalorder %v311, %v313
    %vm378 = vcmp.eq.s32.totalorder %v311, %v314
    %v379 = vsel %vm315, %v247, 0.0
    %v380 = vsel %vm316, %v247, 0.0
    %v381 = vsel %vm317, %v248, 0.0
    %v382 = vsel %vm318, %v248, 0.0
    %v383 = vsel %vm319, %v249, 0.0
    %v384 = vsel %vm320, %v249, 0.0
    %v385 = vsel %vm321, %v250, 0.0
    %v386 = vsel %vm322, %v250, 0.0
    %v387 = vsel %vm323, %v251, 0.0
    %v388 = vsel %vm324, %v251, 0.0
    %v389 = vsel %vm325, %v252, 0.0
    %v390 = vsel %vm326, %v252, 0.0
    %v391 = vsel %vm327, %v253, 0.0
    %v392 = vsel %vm328, %v253, 0.0
    %v393 = vsel %vm329, %v254, 0.0
    %v394 = vsel %vm330, %v254, 0.0
    %v395 = vsel %vm331, %v255, 0.0
    %v396 = vsel %vm332, %v255, 0.0
    %v397 = vsel %vm333, %v256, 0.0
    %v398 = vsel %vm334, %v256, 0.0
    %v399 = vsel %vm335, %v257, 0.0
    %v400 = vsel %vm336, %v257, 0.0
    %v401 = vsel %vm337, %v258, 0.0
    %v402 = vsel %vm338, %v258, 0.0
    %v403 = vsel %vm339, %v259, 0.0
    %v404 = vsel %vm340, %v259, 0.0
    %v405 = vsel %vm341, %v260, 0.0
    %v406 = vsel %vm342, %v260, 0.0
    %v407 = vsel %vm343, %v261, 0.0
    %v408 = vsel %vm344, %v261, 0.0
    %v409 = vsel %vm345, %v262, 0.0
    %v410 = vsel %vm346, %v262, 0.0
    %v411 = vsel %vm347, %v263, 0.0
    %v412 = vsel %vm348, %v263, 0.0
    %v413 = vsel %vm349, %v264, 0.0
    %v414 = vsel %vm350, %v264, 0.0
    %v415 = vsel %vm351, %v265, 0.0
    %v416 = vsel %vm352, %v265, 0.0
    %v417 = vsel %vm353, %v266, 0.0
    %v418 = vsel %vm354, %v266, 0.0
    %v419 = vsel %vm355, %v267, 0.0
    %v420 = vsel %vm356, %v267, 0.0
    %v421 = vsel %vm357, %v268, 0.0
    %v422 = vsel %vm358, %v268, 0.0
    %v423 = vsel %vm359, %v269, 0.0
    %v424 = vsel %vm360, %v269, 0.0
    %v425 = vsel %vm361, %v270, 0.0
    %v426 = vsel %vm362, %v270, 0.0
    %v427 = vsel %vm363, %v271, 0.0
    %v428 = vsel %vm364, %v271, 0.0
    %v429 = vsel %vm365, %v272, 0.0
    %v430 = vsel %vm366, %v272, 0.0
    %v431 = vsel %vm367, %v273, 0.0
    %v432 = vsel %vm368, %v273, 0.0
    %v433 = vsel %vm369, %v274, 0.0
    %v434 = vsel %vm370, %v274, 0.0
    %v435 = vsel %vm371, %v275, 0.0
    %v436 = vsel %vm372, %v275, 0.0
    %v437 = vsel %vm373, %v276, 0.0
    %v438 = vsel %vm374, %v276, 0.0
    %v439 = vsel %vm375, %v277, 0.0
    %v440 = vsel %vm376, %v277, 0.0
    %v441 = vsel %vm377, %v278, 0.0
    %v442 = vsel %vm378, %v278, 0.0
    %v443 = vadd.f32 %v379, %v381
    %v444 = vadd.f32 %v443, %v383
    %v445 = vadd.f32 %v444, %v385
    %v446 = vadd.f32 %v445, %v387
    %v447 = vadd.f32 %v446, %v389
    %v448 = vadd.f32 %v447, %v391
    %v449 = vadd.f32 %v448, %v393
    %v450 = vadd.f32 %v449, %v395
    %v451 = vadd.f32 %v450, %v397
    %v452 = vadd.f32 %v451, %v399
    %v453 = vadd.f32 %v452, %v401
    %v454 = vadd.f32 %v453, %v403
    %v455 = vadd.f32 %v454, %v405
    %v456 = vadd.f32 %v455, %v407
    %v457 = vadd.f32 %v456, %v409
    %v458 = vadd.f32 %v457, %v411
    %v459 = vadd.f32 %v458, %v413
    %v460 = vadd.f32 %v459, %v415
    %v461 = vadd.f32 %v460, %v417
    %v462 = vadd.f32 %v461, %v419
    %v463 = vadd.f32 %v462, %v421
    %v464 = vadd.f32 %v463, %v423
    %v465 = vadd.f32 %v464, %v425
    %v466 = vadd.f32 %v465, %v427
    %v467 = vadd.f32 %v466, %v429
    %v468 = vadd.f32 %v467, %v431
    %v469 = vadd.f32 %v468, %v433
    %v470 = vadd.f32 %v469, %v435
    %v471 = vadd.f32 %v470, %v437
    %v472 = vadd.f32 %v471, %v439
    %v473 = vadd.f32 %v472, %v441
    %v474 = vrot.slane %v473, 4
    %v475 = vadd.f32 %v473, %v474
    %v476 = vrot.slane %v475, 2
    %v477 = vadd.f32 %v475, %v476
    %v478 = vrot.slane %v477, 1
    %v479 = vadd.f32 %v477, %v478
    %v480 = vadd.f32 %v380, %v382
    %v481 = vadd.f32 %v480, %v384
    %v482 = vadd.f32 %v481, %v386
    %v483 = vadd.f32 %v482, %v388
    %v484 = vadd.f32 %v483, %v390
    %v485 = vadd.f32 %v484, %v392
    %v486 = vadd.f32 %v485, %v394
    %v487 = vadd.f32 %v486, %v396
    %v488 = vadd.f32 %v487, %v398
    %v489 = vadd.f32 %v488, %v400
    %v490 = vadd.f32 %v489, %v402
    %v491 = vadd.f32 %v490, %v404
    %v492 = vadd.f32 %v491, %v406
    %v493 = vadd.f32 %v492, %v408
    %v494 = vadd.f32 %v493, %v410
    %v495 = vadd.f32 %v494, %v412
    %v496 = vadd.f32 %v495, %v414
    %v497 = vadd.f32 %v496, %v416
    %v498 = vadd.f32 %v497, %v418
    %v499 = vadd.f32 %v498, %v420
    %v500 = vadd.f32 %v499, %v422
    %v501 = vadd.f32 %v500, %v424
    %v502 = vadd.f32 %v501, %v426
    %v503 = vadd.f32 %v502, %v428
    %v504 = vadd.f32 %v503, %v430
    %v505 = vadd.f32 %v504, %v432
    %v506 = vadd.f32 %v505, %v434
    %v507 = vadd.f32 %v506, %v436
    %v508 = vadd.f32 %v507, %v438
    %v509 = vadd.f32 %v508, %v440
    %v510 = vadd.f32 %v509, %v442
    %v511 = vrot.slane %v510, 4
    %v512 = vadd.f32 %v510, %v511
    %v513 = vrot.slane %v512, 2
    %v514 = vadd.f32 %v512, %v513
    %v515 = vrot.slane %v514, 1
    %v516 = vadd.f32 %v514, %v515
    %v517 = vsel %vm315, 1.0, 0.0
    %v518 = vsel %vm316, 1.0, 0.0
    %v519 = vsel %vm317, 1.0, 0.0
    %v520 = vsel %vm318, 1.0, 0.0
    %v521 = vsel %vm319, 1.0, 0.0
    %v522 = vsel %vm320, 1.0, 0.0
    %v523 = vsel %vm321, 1.0, 0.0
    %v524 = vsel %vm322, 1.0, 0.0
    %v525 = vsel %vm323, 1.0, 0.0
    %v526 = vsel %vm324, 1.0, 0.0
    %v527 = vsel %vm325, 1.0, 0.0
    %v528 = vsel %vm326, 1.0, 0.0
    %v529 = vsel %vm327, 1.0, 0.0
    %v530 = vsel %vm328, 1.0, 0.0
    %v531 = vsel %vm329, 1.0, 0.0
    %v532 = vsel %vm330, 1.0, 0.0
    %v533 = vsel %vm331, 1.0, 0.0
    %v534 = vsel %vm332, 1.0, 0.0
    %v535 = vsel %vm333, 1.0, 0.0
    %v536 = vsel %vm334, 1.0, 0.0
    %v537 = vsel %vm335, 1.0, 0.0
    %v538 = vsel %vm336, 1.0, 0.0
    %v539 = vsel %vm337, 1.0, 0.0
    %v540 = vsel %vm338, 1.0, 0.0
    %v541 = vsel %vm339, 1.0, 0.0
    %v542 = vsel %vm340, 1.0, 0.0
    %v543 = vsel %vm341, 1.0, 0.0
    %v544 = vsel %vm342, 1.0, 0.0
    %v545 = vsel %vm343, 1.0, 0.0
    %v546 = vsel %vm344, 1.0, 0.0
    %v547 = vsel %vm345, 1.0, 0.0
    %v548 = vsel %vm346, 1.0, 0.0
    %v549 = vsel %vm347, 1.0, 0.0
    %v550 = vsel %vm348, 1.0, 0.0
    %v551 = vsel %vm349, 1.0, 0.0
    %v552 = vsel %vm350, 1.0, 0.0
    %v553 = vsel %vm351, 1.0, 0.0
    %v554 = vsel %vm352, 1.0, 0.0
    %v555 = vsel %vm353, 1.0, 0.0
    %v556 = vsel %vm354, 1.0, 0.0
    %v557 = vsel %vm355, 1.0, 0.0
    %v558 = vsel %vm356, 1.0, 0.0
    %v559 = vsel %vm357, 1.0, 0.0
    %v560 = vsel %vm358, 1.0, 0.0
    %v561 = vsel %vm359, 1.0, 0.0
    %v562 = vsel %vm360, 1.0, 0.0
    %v563 = vsel %vm361, 1.0, 0.0
    %v564 = vsel %vm362, 1.0, 0.0
    %v565 = vsel %vm363, 1.0, 0.0
    %v566 = vsel %vm364, 1.0, 0.0
    %v567 = vsel %vm365, 1.0, 0.0
    %v568 = vsel %vm366, 1.0, 0.0
    %v569 = vsel %vm367, 1.0, 0.0
    %v570 = vsel %vm368, 1.0, 0.0
    %v571 = vsel %vm369, 1.0, 0.0
    %v572 = vsel %vm370, 1.0, 0.0
    %v573 = vsel %vm371, 1.0, 0.0
    %v574 = vsel %vm372, 1.0, 0.0
    %v575 = vsel %vm373, 1.0, 0.0
    %v576 = vsel %vm374, 1.0, 0.0
    %v577 = vsel %vm375, 1.0, 0.0
    %v578 = vsel %vm376, 1.0, 0.0
    %v579 = vsel %vm377, 1.0, 0.0
    %v580 = vsel %vm378, 1.0, 0.0
    %v581 = vmul.f32 %v247, %v23
    %v582 = vmul.f32 %v247, %v24
    %v583 = vmul.f32 %v248, %v25
    %v584 = vmul.f32 %v248, %v26
    %v585 = vmul.f32 %v249, %v27
    %v586 = vmul.f32 %v249, %v28
    %v587 = vmul.f32 %v250, %v29
    %v588 = vmul.f32 %v250, %v30
    %v589 = vmul.f32 %v251, %v31
    %v590 = vmul.f32 %v251, %v32
    %v591 = vmul.f32 %v252, %v33
    %v592 = vmul.f32 %v252, %v34
    %v593 = vmul.f32 %v253, %v35
    %v594 = vmul.f32 %v253, %v36
    %v595 = vmul.f32 %v254, %v37
    %v596 = vmul.f32 %v254, %v38
    %v597 = vmul.f32 %v255, %v39
    %v598 = vmul.f32 %v255, %v40
    %v599 = vmul.f32 %v256, %v41
    %v600 = vmul.f32 %v256, %v42
    %v601 = vmul.f32 %v257, %v43
    %v602 = vmul.f32 %v257, %v44
    %v603 = vmul.f32 %v258, %v45
    %v604 = vmul.f32 %v258, %v46
    %v605 = vmul.f32 %v259, %v47
    %v606 = vmul.f32 %v259, %v48
    %v607 = vmul.f32 %v260, %v49
    %v608 = vmul.f32 %v260, %v50
    %v609 = vmul.f32 %v261, %v51
    %v610 = vmul.f32 %v261, %v52
    %v611 = vmul.f32 %v262, %v53
    %v612 = vmul.f32 %v262, %v54
    %v613 = vmul.f32 %v263, %v55
    %v614 = vmul.f32 %v263, %v56
    %v615 = vmul.f32 %v264, %v57
    %v616 = vmul.f32 %v264, %v58
    %v617 = vmul.f32 %v265, %v59
    %v618 = vmul.f32 %v265, %v60
    %v619 = vmul.f32 %v266, %v61
    %v620 = vmul.f32 %v266, %v62
    %v621 = vmul.f32 %v267, %v63
    %v622 = vmul.f32 %v267, %v64
    %v623 = vmul.f32 %v268, %v65
    %v624 = vmul.f32 %v268, %v66
    %v625 = vmul.f32 %v269, %v67
    %v626 = vmul.f32 %v269, %v68
    %v627 = vmul.f32 %v270, %v69
    %v628 = vmul.f32 %v270, %v70
    %v629 = vmul.f32 %v271, %v71
    %v630 = vmul.f32 %v271, %v72
    %v631 = vmul.f32 %v272, %v73
    %v632 = vmul.f32 %v272, %v74
    %v633 = vmul.f32 %v273, %v75
    %v634 = vmul.f32 %v273, %v76
    %v635 = vmul.f32 %v274, %v77
    %v636 = vmul.f32 %v274, %v78
    %v637 = vmul.f32 %v275, %v79
    %v638 = vmul.f32 %v275, %v80
    %v639 = vmul.f32 %v276, %v81
    %v640 = vmul.f32 %v276, %v82
    %v641 = vmul.f32 %v277, %v83
    %v642 = vmul.f32 %v277, %v84
    %v643 = vmul.f32 %v278, %v85
    %v644 = vmul.f32 %v278, %v86
    %v645 = vmul.f32 %v581, %v479
    %v646 = vmul.f32 %v582, %v516
    %v647 = vmul.f32 %v583, %v479
    %v648 = vmul.f32 %v584, %v516
    %v649 = vmul.f32 %v585, %v479
    %v650 = vmul.f32 %v586, %v516
    %v651 = vmul.f32 %v587, %v479
    %v652 = vmul.f32 %v588, %v516
    %v653 = vmul.f32 %v589, %v479
    %v654 = vmul.f32 %v590, %v516
    %v655 = vmul.f32 %v591, %v479
    %v656 = vmul.f32 %v592, %v516
    %v657 = vmul.f32 %v593, %v479
    %v658 = vmul.f32 %v594, %v516
    %v659 = vmul.f32 %v595, %v479
    %v660 = vmul.f32 %v596, %v516
    %v661 = vmul.f32 %v597, %v479
    %v662 = vmul.f32 %v598, %v516
    %v663 = vmul.f32 %v599, %v479
    %v664 = vmul.f32 %v600, %v516
    %v665 = vmul.f32 %v601, %v479
    %v666 = vmul.f32 %v602, %v516
    %v667 = vmul.f32 %v603, %v479
    %v668 = vmul.f32 %v604, %v516
    %v669 = vmul.f32 %v605, %v479
    %v670 = vmul.f32 %v606, %v516
    %v671 = vmul.f32 %v607, %v479
    %v672 = vmul.f32 %v608, %v516
    %v673 = vmul.f32 %v609, %v479
    %v674 = vmul.f32 %v610, %v516
    %v675 = vmul.f32 %v611, %v479
    %v676 = vmul.f32 %v612, %v516
    %v677 = vmul.f32 %v613, %v479
    %v678 = vmul.f32 %v614, %v516
    %v679 = vmul.f32 %v615, %v479
    %v680 = vmul.f32 %v616, %v516
    %v681 = vmul.f32 %v617, %v479
    %v682 = vmul.f32 %v618, %v516
    %v683 = vmul.f32 %v619, %v479
    %v684 = vmul.f32 %v620, %v516
    %v685 = vmul.f32 %v621, %v479
    %v686 = vmul.f32 %v622, %v516
    %v687 = vmul.f32 %v623, %v479
    %v688 = vmul.f32 %v624, %v516
    %v689 = vmul.f32 %v625, %v479
    %v690 = vmul.f32 %v626, %v516
    %v691 = vmul.f32 %v627, %v479
    %v692 = vmul.f32 %v628, %v516
    %v693 = vmul.f32 %v629, %v479
    %v694 = vmul.f32 %v630, %v516
    %v695 = vmul.f32 %v631, %v479
    %v696 = vmul.f32 %v632, %v516
    %v697 = vmul.f32 %v633, %v479
    %v698 = vmul.f32 %v634, %v516
    %v699 = vmul.f32 %v635, %v479
    %v700 = vmul.f32 %v636, %v516
    %v701 = vmul.f32 %v637, %v479
    %v702 = vmul.f32 %v638, %v516
    %v703 = vmul.f32 %v639, %v479
    %v704 = vmul.f32 %v640, %v516
    %v705 = vmul.f32 %v641, %v479
    %v706 = vmul.f32 %v642, %v516
    %v707 = vmul.f32 %v643, %v479
    %v708 = vmul.f32 %v644, %v516
    %v709 = vsub.f32 %v517, %v645
    %v710 = vsub.f32 %v518, %v646
    %v711 = vsub.f32 %v519, %v647
    %v712 = vsub.f32 %v520, %v648
    %v713 = vsub.f32 %v521, %v649
    %v714 = vsub.f32 %v522, %v650
    %v715 = vsub.f32 %v523, %v651
    %v716 = vsub.f32 %v524, %v652
    %v717 = vsub.f32 %v525, %v653
    %v718 = vsub.f32 %v526, %v654
    %v719 = vsub.f32 %v527, %v655
    %v720 = vsub.f32 %v528, %v656
    %v721 = vsub.f32 %v529, %v657
    %v722 = vsub.f32 %v530, %v658
    %v723 = vsub.f32 %v531, %v659
    %v724 = vsub.f32 %v532, %v660
    %v725 = vsub.f32 %v533, %v661
    %v726 = vsub.f32 %v534, %v662
    %v727 = vsub.f32 %v535, %v663
    %v728 = vsub.f32 %v536, %v664
    %v729 = vsub.f32 %v537, %v665
    %v730 = vsub.f32 %v538, %v666
    %v731 = vsub.f32 %v539, %v667
    %v732 = vsub.f32 %v540, %v668
    %v733 = vsub.f32 %v541, %v669
    %v734 = vsub.f32 %v542, %v670
    %v735 = vsub.f32 %v543, %v671
    %v736 = vsub.f32 %v544, %v672
    %v737 = vsub.f32 %v545, %v673
    %v738 = vsub.f32 %v546, %v674
    %v739 = vsub.f32 %v547, %v675
    %v740 = vsub.f32 %v548, %v676
    %v741 = vsub.f32 %v549, %v677
    %v742 = vsub.f32 %v550, %v678
    %v743 = vsub.f32 %v551, %v679
    %v744 = vsub.f32 %v552, %v680
    %v745 = vsub.f32 %v553, %v681
    %v746 = vsub.f32 %v554, %v682
    %v747 = vsub.f32 %v555, %v683
    %v748 = vsub.f32 %v556, %v684
    %v749 = vsub.f32 %v557, %v685
    %v750 = vsub.f32 %v558, %v686
    %v751 = vsub.f32 %v559, %v687
    %v752 = vsub.f32 %v560, %v688
    %v753 = vsub.f32 %v561, %v689
    %v754 = vsub.f32 %v562, %v690
    %v755 = vsub.f32 %v563, %v691
    %v756 = vsub.f32 %v564, %v692
    %v757 = vsub.f32 %v565, %v693
    %v758 = vsub.f32 %v566, %v694
    %v759 = vsub.f32 %v567, %v695
    %v760 = vsub.f32 %v568, %v696
    %v761 = vsub.f32 %v569, %v697
    %v762 = vsub.f32 %v570, %v698
    %v763 = vsub.f32 %v571, %v699
    %v764 = vsub.f32 %v572, %v700
    %v765 = vsub.f32 %v573, %v701
    %v766 = vsub.f32 %v574, %v702
    %v767 = vsub.f32 %v575, %v703
    %v768 = vsub.f32 %v576, %v704
    %v769 = vsub.f32 %v577, %v705
    %v770 = vsub.f32 %v578, %v706
    %v771 = vsub.f32 %v579, %v707
    %v772 = vsub.f32 %v580, %v708
    %773 = vst [vmem:[#allocation5] sm:$0xff] %v709
    %774 = vst [vmem:[#allocation5 + $0x8] sm:$0xff] %v710
    %775 = vst [vmem:[#allocation5 + $0x10] sm:$0xff] %v711
    %776 = vst [vmem:[#allocation5 + $0x18] sm:$0xff] %v712
    %777 = vst [vmem:[#allocation5 + $0x20] sm:$0xff] %v713
    %778 = vst [vmem:[#allocation5 + $0x28] sm:$0xff] %v714
    %779 = vst [vmem:[#allocation5 + $0x30] sm:$0xff] %v715
    %780 = vst [vmem:[#allocation5 + $0x38] sm:$0xff] %v716
    %781 = vst [vmem:[#allocation5 + $0x40] sm:$0xff] %v717
    %782 = vst [vmem:[#allocation5 + $0x48] sm:$0xff] %v718
    %783 = vst [vmem:[#allocation5 + $0x50] sm:$0xff] %v719
    %784 = vst [vmem:[#allocation5 + $0x58] sm:$0xff] %v720
    %785 = vst [vmem:[#allocation5 + $0x60] sm:$0xff] %v721
    %786 = vst [vmem:[#allocation5 + $0x68] sm:$0xff] %v722
    %787 = vst [vmem:[#allocation5 + $0x70] sm:$0xff] %v723
    %788 = vst [vmem:[#allocation5 + $0x78] sm:$0xff] %v724
    %789 = vst [vmem:[#allocation5 + $0x80] sm:$0xff] %v725
    %790 = vst [vmem:[#allocation5 + $0x88] sm:$0xff] %v726
    %791 = vst [vmem:[#allocation5 + $0x90] sm:$0xff] %v727
    %792 = vst [vmem:[#allocation5 + $0x98] sm:$0xff] %v728
    %793 = vst [vmem:[#allocation5 + $0xa0] sm:$0xff] %v729
    %794 = vst [vmem:[#allocation5 + $0xa8] sm:$0xff] %v730
    %795 = vst [vmem:[#allocation5 + $0xb0] sm:$0xff] %v731
    %796 = vst [vmem:[#allocation5 + $0xb8] sm:$0xff] %v732
    %797 = vst [vmem:[#allocation5 + $0xc0] sm:$0xff] %v733
    %798 = vst [vmem:[#allocation5 + $0xc8] sm:$0xff] %v734
    %799 = vst [vmem:[#allocation5 + $0xd0] sm:$0xff] %v735
    %800 = vst [vmem:[#allocation5 + $0xd8] sm:$0xff] %v736
    %801 = vst [vmem:[#allocation5 + $0xe0] sm:$0xff] %v737
    %802 = vst [vmem:[#allocation5 + $0xe8] sm:$0xff] %v738
    %803 = vst [vmem:[#allocation5 + $0xf0] sm:$0xff] %v739
    %804 = vst [vmem:[#allocation5 + $0xf8] sm:$0xff] %v740
    %805 = vst [vmem:[#allocation5 + $0x100] sm:$0xff] %v741
    %806 = vst [vmem:[#allocation5 + $0x108] sm:$0xff] %v742
    %807 = vst [vmem:[#allocation5 + $0x110] sm:$0xff] %v743
    %808 = vst [vmem:[#allocation5 + $0x118] sm:$0xff] %v744
    %809 = vst [vmem:[#allocation5 + $0x120] sm:$0xff] %v745
    %810 = vst [vmem:[#allocation5 + $0x128] sm:$0xff] %v746
    %811 = vst [vmem:[#allocation5 + $0x130] sm:$0xff] %v747
    %812 = vst [vmem:[#allocation5 + $0x138] sm:$0xff] %v748
    %813 = vst [vmem:[#allocation5 + $0x140] sm:$0xff] %v749
    %814 = vst [vmem:[#allocation5 + $0x148] sm:$0xff] %v750
    %815 = vst [vmem:[#allocation5 + $0x150] sm:$0xff] %v751
    %816 = vst [vmem:[#allocation5 + $0x158] sm:$0xff] %v752
    %817 = vst [vmem:[#allocation5 + $0x160] sm:$0xff] %v753
    %818 = vst [vmem:[#allocation5 + $0x168] sm:$0xff] %v754
    %819 = vst [vmem:[#allocation5 + $0x170] sm:$0xff] %v755
    %820 = vst [vmem:[#allocation5 + $0x178] sm:$0xff] %v756
    %821 = vst [vmem:[#allocation5 + $0x180] sm:$0xff] %v757
    %822 = vst [vmem:[#allocation5 + $0x188] sm:$0xff] %v758
    %823 = vst [vmem:[#allocation5 + $0x190] sm:$0xff] %v759
    %824 = vst [vmem:[#allocation5 + $0x198] sm:$0xff] %v760
    %825 = vst [vmem:[#allocation5 + $0x1a0] sm:$0xff] %v761
    %826 = vst [vmem:[#allocation5 + $0x1a8] sm:$0xff] %v762
    %827 = vst [vmem:[#allocation5 + $0x1b0] sm:$0xff] %v763
    %828 = vst [vmem:[#allocation5 + $0x1b8] sm:$0xff] %v764
    %829 = vst [vmem:[#allocation5 + $0x1c0] sm:$0xff] %v765
    %830 = vst [vmem:[#allocation5 + $0x1c8] sm:$0xff] %v766
    %831 = vst [vmem:[#allocation5 + $0x1d0] sm:$0xff] %v767
    %832 = vst [vmem:[#allocation5 + $0x1d8] sm:$0xff] %v768
    %833 = vst [vmem:[#allocation5 + $0x1e0] sm:$0xff] %v769
    %834 = vst [vmem:[#allocation5 + $0x1e8] sm:$0xff] %v770
    %835 = vst [vmem:[#allocation5 + $0x1f0] sm:$0xff] %v771
    %836 = vst [vmem:[#allocation5 + $0x1f8] sm:$0xff] %v772
    // Predicated region
    $region10: #{fused_laplacian.1} parent=1 // pred_check
      _
    $region11: #{fused_laplacian.1} parent=1 // pred_check_branch
      %838 = sbr.rel (0) target = $region13
    $region12: #{fused_laplacian.1} parent=1 // pred_region
      %s840 = ssub.s32 8192, 8192
      %841 = vsyncadd [#allocation4], %s840
      %s842 = sshll.u32 [#allocation5], 4
      %s843 = int_to_ptr.vmem [resolvable:$true] %s842
      %848 = dma.vmem_to_hbm [thread:$0]  %s843, 8192, %s1, [#allocation4], 256, 256, 16
    $region13: #{fused_laplacian.1} parent=1 // pred_fallthru
      _
    // Predicated region
    $region14: #{fused_laplacian.1} parent=1 // pred_check
      _
    $region15: #{fused_laplacian.1} parent=1 // pred_check_branch
      %850 = sbr.rel (0) target = $region17
    $region16: #{fused_laplacian.1} parent=1 // pred_region
      %851 = dma.done [#allocation4], 8192
    $region17: #{fused_laplacian.1} parent=1 // pred_fallthru
      _
    %852 = vsyncpa [#allocation3], 1
    %853 = vsyncpa [#allocation4], 1

</llo_original>
